<compile_context>
chip_gen: v7x
topology: tpu7x:2x2x1
jax: 0.10.0
libtpu: 0.0.40
codegen_flags: <defaults>
</compile_context>

<pallas_src>
import functools

import numpy as np
import jax
import jax.numpy as jnp
from jax.experimental import pallas as pl
from jax.experimental.pallas import tpu as pltpu


def _round_up(x, m):
    return ((x + m - 1) // m) * m


@functools.lru_cache(maxsize=None)
def _vmem_capacity_bytes():
    """Physical VMEM per TensorCore (64 MiB on v7x, 128 MiB on v5e/v6e)."""
    try:
        cap = getattr(pltpu.get_tpu_info(), "vmem_capacity_bytes", None)
        if cap:
            return int(cap)
    except Exception:
        pass
    return 64 * 1024 * 1024  # conservative default (v7x)


# ----------------------------------------------------------------------------- kernel

def _segment_mean_kernel(seg_ref, feat_ref, o_ref, acc_ref, *, count_col):
    """out[s, :] = mean_{i : seg_id[i] == s} feat[i, :]   (empty segments -> 0).

    grid = (s_pad//TS, n_pad//TN); axis 0 tiles the output segments ("parallel"),
    axis 1 tiles the contraction over entities ("arbitrary", reduction, last).
    The incidence one-hot is built in-register in bf16 from the int32 segment ids;
    the per-segment count rides as an extra all-ones feature column.
    """
    ts = acc_ref.shape[0]
    tn = seg_ref.shape[1]
    k = pl.program_id(1)

    @pl.when(k == 0)
    def _init():
        acc_ref[...] = jnp.zeros_like(acc_ref)

    # Local segment ids for this segment tile: subtract row0 from the (1, TN) ids
    # (cheap) instead of adding row0 to the whole (TS, TN) iota.
    seg_local = seg_ref[...] - pl.program_id(0) * ts                   # (1, TN) int32
    rows = jax.lax.broadcasted_iota(jnp.int32, (ts, tn), 0)            # (TS, TN)
    onehot = (rows == seg_local).astype(jnp.bfloat16)                  # exact 0/1, bf16
    acc_ref[...] += jnp.dot(onehot, feat_ref[...],
                            preferred_element_type=jnp.float32)        # bf16 MXU, f32 acc

    @pl.when(k == pl.num_programs(1) - 1)
    def _finalize():
        cnt = acc_ref[:, count_col:count_col + 1]                      # (TS, 1) counts
        inv = pl.reciprocal(jnp.maximum(cnt, 1.0), approx=True)        # EUP, ~free
        o_ref[...] = acc_ref[...] * inv                                # mean (f32)


def segment_mean(seg_ids, feats, num_segments):
    """Mean-pool rows of `feats` by `seg_ids` (ids < 0 are dropped). Returns (num_segments, D) f32."""
    n, d = feats.shape
    # +1 feature column of ones carries the per-segment count through the matmul.
    d_pad = _round_up(d + 1, 128)                       # lane-dense output stores

    # ---- generation-aware, VMEM-budget-driven tile sizes ----------------------
    vmem_cap = _vmem_capacity_bytes()
    budget = max(int(vmem_cap * 0.6) - (4 << 20), 8 << 20)
    # contraction tile TN: bf16 feature tile, double-buffered (~1/3 of the budget)
    tn = ((budget // 3) // (2 * d_pad * 2) // 128) * 128
    tn = max(128, min(2048, tn))
    tn = min(tn, _round_up(max(n, 1), 128))
    n_pad = _round_up(max(n, 1), tn)
    # segment tile TS: f32 acc scratch + double-buffered f32 output + conservative
    # allowance (~8 B/elem) for the in-register one-hot / iota transients.
    remaining = budget - 2 * tn * d_pad * 2
    ts = (remaining // (12 * d_pad + 8 * tn) // 8) * 8
    ts = max(8, min(1024, ts))
    ts = min(ts, _round_up(max(num_segments, 1), 8))
    s_pad = _round_up(max(num_segments, 1), ts)

    # bf16 feature stream (halves HBM bytes vs f32); the count column 1.0 is exact
    # in bf16, so counts accumulate exactly in f32 (up to 2^24 members/segment).
    # TODO(synk): for d << 128 the zero-padded copy still reads ~128/d x extra lanes;
    # a full-width (n, d) feature BlockSpec + separate count pass would remove it.
    feats_p = jnp.zeros((n_pad, d_pad), jnp.bfloat16)
    feats_p = feats_p.at[:n, :d].set(feats.astype(jnp.bfloat16))
    feats_p = feats_p.at[:n, d].set(jnp.ones((n,), jnp.bfloat16))
    seg_p = jnp.full((1, n_pad), -1, jnp.int32).at[0, :n].set(seg_ids.astype(jnp.int32))

    out = pl.pallas_call(
        functools.partial(_segment_mean_kernel, count_col=d),
        out_shape=jax.ShapeDtypeStruct((s_pad, d_pad), jnp.float32),
        grid=(s_pad // ts, n_pad // tn),
        in_specs=[
            pl.BlockSpec((1, tn), lambda i, k: (0, k)),        # int32 segment ids
            # TODO(synk): add pipeline_mode=pl.Buffered(3) here if xprof shows the
            # feature DMA exposed at large shapes (budget permitting on v7x).
            pl.BlockSpec((tn, d_pad), lambda i, k: (k, 0)),    # bf16 features
        ],
        out_specs=pl.BlockSpec((ts, d_pad), lambda i, k: (i, 0)),
        scratch_shapes=[
            pltpu.VMEM((ts, d_pad), jnp.float32),              # f32 sum accumulator
        ],
        compiler_params=pltpu.CompilerParams(
            dimension_semantics=("parallel", "arbitrary"),
            vmem_limit_bytes=int(min(vmem_cap * 3 // 4, 112 << 20)),
        ),
    )(seg_p, feats_p)
    return out[:num_segments, :d]


# ----------------------------------------------------------------------------- module

@functools.partial(jax.jit, static_argnames=("num_clusters", "num_graphs"))
def average_graph_pool(nodes, edges, edge_index, batch, assignment, *, num_clusters, num_graphs):
    n_edges = edges.shape[0]
    c_max = num_graphs * num_clusters

    # -- 1. hard cluster per node.  The masked-softmax over the batch-tiled assignment,
    #       followed by argmax, reduces exactly to batch*K + argmax(assignment) (softmax
    #       is monotone inside each graph's block), so no O(N * B*K) matrix is built.
    cluster_raw = batch.astype(jnp.int32) * num_clusters \
        + jnp.argmax(assignment, axis=1).astype(jnp.int32)
    # contiguous relabel (torch .unique(return_inverse=True)); unused clusters keep zero rows.
    _, cluster = jnp.unique(cluster_raw, size=c_max, fill_value=c_max, return_inverse=True)
    cluster = cluster.astype(jnp.int32)

    # -- 2. coarse node features: mean pool nodes by cluster (Pallas) --
    coarse_nodes = segment_mean(cluster, nodes, c_max)

    # -- 3. coarse edges: cluster[edge_index], drop self loops, merge duplicates by mean --
    src_c = jnp.take(cluster, edge_index[0])        # index glue in plain JAX
    dst_c = jnp.take(cluster, edge_index[1])
    self_loop = src_c == dst_c
    sentinel = c_max * c_max
    pair = jnp.where(self_loop, sentinel, src_c * c_max + dst_c)   # lexicographic pair id
    uniq_pair, inv = jnp.unique(pair, size=n_edges, fill_value=sentinel, return_inverse=True)
    seg_e = jnp.where(self_loop, -1, inv.astype(jnp.int32))        # -1 => dropped in the kernel
    coarse_edges = segment_mean(seg_e, edges, n_edges)             # (Pallas)
    valid = uniq_pair < sentinel
    coarse_edge_index = jnp.stack([
        jnp.where(valid, uniq_pair // c_max, -1),
        jnp.where(valid, uniq_pair % c_max, -1),
    ]).astype(jnp.int32)

    # TODO(synk): torch's dynamic compaction (dropping empty clusters / absent coarse edges)
    # is not expressible with static shapes; trailing rows are zero / -1 padding instead.
    return coarse_nodes, coarse_edges, coarse_edge_index


# ----------------------------------------------------------------------------- NumPy reference

def average_graph_pool_ref(nodes, edges, edge_index, batch, assignment, num_clusters):
    """Dynamic-shape reference mirroring the PyTorch module literally."""
    nodes = np.asarray(nodes, np.float64)
    edges = np.asarray(edges, np.float64)
    edge_index = np.asarray(edge_index)
    batch = np.asarray(batch)
    assignment = np.asarray(assignment)

    raw = batch * num_clusters + assignment.argmax(axis=1)
    _, cluster = np.unique(raw, return_inverse=True)
    n_c = int(cluster.max()) + 1

    m = np.zeros((n_c, nodes.shape[0]))
    m[cluster, np.arange(nodes.shape[0])] = 1.0
    m /= np.maximum(m.sum(axis=1, keepdims=True), 1.0)
    coarse_nodes = m @ nodes

    ce = cluster[edge_index]
    keep = ce[0] != ce[1]                       # remove_self_loops
    ce = ce[:, keep]
    cedges = edges[keep]
    if ce.shape[1] > 0:
        pair = ce[0] * n_c + ce[1]
        upair, inv = np.unique(pair, return_inverse=True)
        me = np.zeros((len(upair), len(pair)))
        me[inv, np.arange(len(pair))] = 1.0
        me /= np.maximum(me.sum(axis=1, keepdims=True), 1.0)
        cedges = me @ cedges
        ce = np.stack([upair // n_c, upair % n_c])
    return coarse_nodes, cedges, ce


# ----------------------------------------------------------------------------- main

if __name__ == "__main__":
    N_NODES, N_EDGES = 16, 32
    D_V, D_E = 8, 8
    NUM_CLUSTERS, NUM_GRAPHS = 4, 2

    key = jax.random.PRNGKey(0)
    k_n, k_e, k_a, k_s0, k_d0, k_s1, k_d1 = jax.random.split(key, 7)

    nodes = jax.random.normal(k_n, (N_NODES, D_V), jnp.float32)
    edges = jax.random.normal(k_e, (N_EDGES, D_E), jnp.float32)
    assignment = jax.random.normal(k_a, (N_NODES, NUM_CLUSTERS), jnp.float32)
    batch = jnp.concatenate([jnp.zeros((N_NODES // 2,), jnp.int32),
                             jnp.ones((N_NODES - N_NODES // 2,), jnp.int32)])
    # edges stay inside their graph (standard PyG batching)
    half_n, half_e = N_NODES // 2, N_EDGES // 2
    src = jnp.concatenate([jax.random.randint(k_s0, (half_e,), 0, half_n),
                           jax.random.randint(k_s1, (N_EDGES - half_e,), half_n, N_NODES)])
    dst = jnp.concatenate([jax.random.randint(k_d0, (half_e,), 0, half_n),
                           jax.random.randint(k_d1, (N_EDGES - half_e,), half_n, N_NODES)])
    edge_index = jnp.stack([src, dst]).astype(jnp.int32)

    out = average_graph_pool(nodes, edges, edge_index, batch, assignment,
                             num_clusters=NUM_CLUSTERS, num_graphs=NUM_GRAPHS)
    coarse_nodes, coarse_edges, coarse_edge_index = jax.block_until_ready(out)

    # --- check leading (used) rows against the dynamic reference; rest is padding ---
    # The kernel streams features in bf16, so the reference uses bf16-quantized inputs
    # (accumulation stays f32; remaining delta is the approx reciprocal, ~1e-4 rel).
    nodes_q = np.asarray(nodes.astype(jnp.bfloat16).astype(jnp.float32))
    edges_q = np.asarray(edges.astype(jnp.bfloat16).astype(jnp.float32))
    cn_ref, ce_ref, cei_ref = average_graph_pool_ref(
        nodes_q, edges_q, edge_index, batch, assignment, NUM_CLUSTERS)
    n_c, n_e = cn_ref.shape[0], ce_ref.shape[0]

    cn = np.asarray(coarse_nodes)
    cef = np.asarray(coarse_edges)
    cei = np.asarray(coarse_edge_index)

    assert cn.shape == (NUM_GRAPHS * NUM_CLUSTERS, D_V)
    assert cef.shape == (N_EDGES, D_E) and cei.shape == (2, N_EDGES)
    assert np.allclose(cn[:n_c], cn_ref, atol=5e-3, rtol=5e-3)
    assert np.allclose(cn[n_c:], 0.0)
    assert np.allclose(cef[:n_e], ce_ref, atol=5e-3, rtol=5e-3)
    assert np.allclose(cef[n_e:], 0.0)
    assert np.array_equal(cei[:, :n_e], cei_ref)
    assert np.all(cei[:, n_e:] == -1)

    print("KERNEL_OK")
</pallas_src>

<mosaic_0001>
module attributes {stable_mosaic.version = 11 : i64} {
  func.func private @main(%arg0: i32) attributes {dimension_semantics = [#tpu.dimension_semantics<core_parallel>], iteration_bounds = array<i64: 2>, tpu.core_type = #tpu.core_type<sc_scalar_subcore>, window_params = []} {
    return
  }
}

module attributes {stable_mosaic.version = 11 : i64} {
  func.func private @main(%arg0: i32) attributes {dimension_semantics = [#tpu.dimension_semantics<core_parallel>], iteration_bounds = array<i64: 2>, tpu.core_type = #tpu.core_type<sc_scalar_subcore>, window_params = []} {
    return
  }
}

module attributes {stable_mosaic.version = 11 : i64} {
  func.func @_segment_mean_kernel(%arg0: i32, %arg1: i32, %arg2: memref<1x128xi32, #tpu.memory_space<vmem>>, %arg3: memref<128x128xbf16, #tpu.memory_space<vmem>>, %arg4: memref<32x128xf32, #tpu.memory_space<vmem>>, %arg5: memref<32x128xf32, #tpu.memory_space<vmem>>) attributes {dimension_semantics = [#tpu.dimension_semantics<parallel>, #tpu.dimension_semantics<arbitrary>], iteration_bounds = array<i64: 1, 1>, scalar_prefetch = 0 : i64, scratch_operands = 1 : i64, tpu.core_type = #tpu.core_type<tc>, window_params = [{transform_indices = @transform_0, window_bounds = array<i64: 1, 128>}, {transform_indices = @transform_1, window_bounds = array<i64: 128, 128>}, {transform_indices = @transform_2, window_bounds = array<i64: 32, 128>}]} {
    %c0_i32 = arith.constant 0 : i32
    %0 = arith.cmpi eq, %arg1, %c0_i32 : i32
    %1 = arith.extui %0 : i1 to i32
    %c0_i32_0 = arith.constant 0 : i32
    %2 = arith.cmpi ne, %1, %c0_i32_0 : i32
    scf.if %2 {
      %cst_10 = arith.constant 0.000000e+00 : f32
      %21 = vector.broadcast %cst_10 : f32 to vector<32x128xf32>
      %c0_11 = arith.constant 0 : index
      %c0_12 = arith.constant 0 : index
      %22 = vector.load %arg5[%c0_11, %c0_12] : memref<32x128xf32, #tpu.memory_space<vmem>>, vector<32x128xf32>
      tpu.vector_store %arg5[%c0_11, %c0_12], %21 {strides = array<i32>} : memref<32x128xf32, #tpu.memory_space<vmem>>, vector<32x128xf32>,
    } else {
    }
    %c0 = arith.constant 0 : index
    %c0_1 = arith.constant 0 : index
    %3 = vector.load %arg2[%c0, %c0_1] : memref<1x128xi32, #tpu.memory_space<vmem>>, vector<1x128xi32>
    %c32_i32 = arith.constant 32 : i32
    %4 = arith.muli %arg0, %c32_i32 : i32
    %5 = vector.broadcast %4 : i32 to vector<1x128xi32>
    %6 = arith.subi %3, %5 : vector<1x128xi32>
    %7 = tpu.iota {dimensions = array<i32: 0>} : vector<32x128xi32>
    %8 = vector.broadcast %6 : vector<1x128xi32> to vector<32x128xi32>
    %9 = arith.cmpi eq, %7, %8 : vector<32x128xi32>
    %10 = arith.extui %9 : vector<32x128xi1> to vector<32x128xi32>
    %11 = arith.sitofp %10 : vector<32x128xi32> to vector<32x128xf32>
    %12 = arith.truncf %11 : vector<32x128xf32> to vector<32x128xbf16>
    %c0_2 = arith.constant 0 : index
    %c0_3 = arith.constant 0 : index
    %13 = vector.load %arg5[%c0_2, %c0_3] : memref<32x128xf32, #tpu.memory_space<vmem>>, vector<32x128xf32>
    %c0_4 = arith.constant 0 : index
    %c0_5 = arith.constant 0 : index
    %14 = vector.load %arg3[%c0_4, %c0_5] : memref<128x128xbf16, #tpu.memory_space<vmem>>, vector<128x128xbf16>
    %cst = arith.constant dense<0.000000e+00> : vector<32x128xf32>
    %15 = tpu.matmul %12, %14, %cst {dimension_numbers = #tpu.dot_dimension_numbers<[1], [0], [0], [1], [0, 0, 1, 1], [], []>} : vector<32x128xbf16>, vector<128x128xbf16>, vector<32x128xf32> -> vector<32x128xf32>
    %16 = arith.addf %13, %15 : vector<32x128xf32>
    %c0_6 = arith.constant 0 : index
    %c0_7 = arith.constant 0 : index
    %17 = vector.load %arg5[%c0_6, %c0_7] : memref<32x128xf32, #tpu.memory_space<vmem>>, vector<32x128xf32>
    tpu.vector_store %arg5[%c0_6, %c0_7], %16 {strides = array<i32>} : memref<32x128xf32, #tpu.memory_space<vmem>>, vector<32x128xf32>,
    %c0_i32_8 = arith.constant 0 : i32
    %18 = arith.cmpi eq, %arg1, %c0_i32_8 : i32
    %19 = arith.extui %18 : i1 to i32
    %c0_i32_9 = arith.constant 0 : i32
    %20 = arith.cmpi ne, %19, %c0_i32_9 : i32
    scf.if %20 {
      %c0_10 = arith.constant 0 : index
      %c8 = arith.constant 8 : index
      %21 = vector.load %arg5[%c0_10, %c8] : memref<32x128xf32, #tpu.memory_space<vmem>>, vector<32x1xf32>
      %cst_11 = arith.constant 1.000000e+00 : f32
      %22 = vector.broadcast %cst_11 : f32 to vector<32x1xf32>
      %23 = arith.maximumf %21, %22 : vector<32x1xf32>
      %24 = tpu.reciprocal %23 {approx = true} : vector<32x1xf32> -> vector<32x1xf32>
      %c0_12 = arith.constant 0 : index
      %c0_13 = arith.constant 0 : index
      %25 = vector.load %arg5[%c0_12, %c0_13] : memref<32x128xf32, #tpu.memory_space<vmem>>, vector<32x128xf32>
      %26 = vector.broadcast %24 : vector<32x1xf32> to vector<32x128xf32>
      %27 = arith.mulf %25, %26 : vector<32x128xf32>
      %c0_14 = arith.constant 0 : index
      %c0_15 = arith.constant 0 : index
      %28 = vector.load %arg4[%c0_14, %c0_15] : memref<32x128xf32, #tpu.memory_space<vmem>>, vector<32x128xf32>
      tpu.vector_store %arg4[%c0_14, %c0_15], %27 {strides = array<i32>} : memref<32x128xf32, #tpu.memory_space<vmem>>, vector<32x128xf32>,
    } else {
    }
    return
  }
  func.func @transform_0(%arg0: i32, %arg1: i32) -> (i32, i32) {
    %c0_i32 = arith.constant 0 : i32
    %c0_i32_0 = arith.constant 0 : i32
    return %c0_i32, %arg1 : i32, i32
  }
  func.func @transform_1(%arg0: i32, %arg1: i32) -> (i32, i32) {
    %c0_i32 = arith.constant 0 : i32
    %c0_i32_0 = arith.constant 0 : i32
    return %arg1, %c0_i32 : i32, i32
  }
  func.func @transform_2(%arg0: i32, %arg1: i32) -> (i32, i32) {
    %c0_i32 = arith.constant 0 : i32
    %c0_i32_0 = arith.constant 0 : i32
    return %arg0, %c0_i32 : i32, i32
  }
}

module attributes {stable_mosaic.version = 11 : i64} {
  func.func @_segment_mean_kernel(%arg0: i32, %arg1: i32, %arg2: memref<1x128xi32, #tpu.memory_space<vmem>>, %arg3: memref<128x128xbf16, #tpu.memory_space<vmem>>, %arg4: memref<8x128xf32, #tpu.memory_space<vmem>>, %arg5: memref<8x128xf32, #tpu.memory_space<vmem>>) attributes {dimension_semantics = [#tpu.dimension_semantics<parallel>, #tpu.dimension_semantics<arbitrary>], iteration_bounds = array<i64: 1, 1>, scalar_prefetch = 0 : i64, scratch_operands = 1 : i64, tpu.core_type = #tpu.core_type<tc>, window_params = [{transform_indices = @transform_0, window_bounds = array<i64: 1, 128>}, {transform_indices = @transform_1, window_bounds = array<i64: 128, 128>}, {transform_indices = @transform_2, window_bounds = array<i64: 8, 128>}]} {
    %c0_i32 = arith.constant 0 : i32
    %0 = arith.cmpi eq, %arg1, %c0_i32 : i32
    %1 = arith.extui %0 : i1 to i32
    %c0_i32_0 = arith.constant 0 : i32
    %2 = arith.cmpi ne, %1, %c0_i32_0 : i32
    scf.if %2 {
      %cst_10 = arith.constant 0.000000e+00 : f32
      %21 = vector.broadcast %cst_10 : f32 to vector<8x128xf32>
      %c0_11 = arith.constant 0 : index
      %c0_12 = arith.constant 0 : index
      %22 = vector.load %arg5[%c0_11, %c0_12] : memref<8x128xf32, #tpu.memory_space<vmem>>, vector<8x128xf32>
      tpu.vector_store %arg5[%c0_11, %c0_12], %21 {strides = array<i32>} : memref<8x128xf32, #tpu.memory_space<vmem>>, vector<8x128xf32>,
    } else {
    }
    %c0 = arith.constant 0 : index
    %c0_1 = arith.constant 0 : index
    %3 = vector.load %arg2[%c0, %c0_1] : memref<1x128xi32, #tpu.memory_space<vmem>>, vector<1x128xi32>
    %c8_i32 = arith.constant 8 : i32
    %4 = arith.muli %arg0, %c8_i32 : i32
    %5 = vector.broadcast %4 : i32 to vector<1x128xi32>
    %6 = arith.subi %3, %5 : vector<1x128xi32>
    %7 = tpu.iota {dimensions = array<i32: 0>} : vector<8x128xi32>
    %8 = vector.broadcast %6 : vector<1x128xi32> to vector<8x128xi32>
    %9 = arith.cmpi eq, %7, %8 : vector<8x128xi32>
    %10 = arith.extui %9 : vector<8x128xi1> to vector<8x128xi32>
    %11 = arith.sitofp %10 : vector<8x128xi32> to vector<8x128xf32>
    %12 = arith.truncf %11 : vector<8x128xf32> to vector<8x128xbf16>
    %c0_2 = arith.constant 0 : index
    %c0_3 = arith.constant 0 : index
    %13 = vector.load %arg5[%c0_2, %c0_3] : memref<8x128xf32, #tpu.memory_space<vmem>>, vector<8x128xf32>
    %c0_4 = arith.constant 0 : index
    %c0_5 = arith.constant 0 : index
    %14 = vector.load %arg3[%c0_4, %c0_5] : memref<128x128xbf16, #tpu.memory_space<vmem>>, vector<128x128xbf16>
    %cst = arith.constant dense<0.000000e+00> : vector<8x128xf32>
    %15 = tpu.matmul %12, %14, %cst {dimension_numbers = #tpu.dot_dimension_numbers<[1], [0], [0], [1], [0, 0, 1, 1], [], []>} : vector<8x128xbf16>, vector<128x128xbf16>, vector<8x128xf32> -> vector<8x128xf32>
    %16 = arith.addf %13, %15 : vector<8x128xf32>
    %c0_6 = arith.constant 0 : index
    %c0_7 = arith.constant 0 : index
    %17 = vector.load %arg5[%c0_6, %c0_7] : memref<8x128xf32, #tpu.memory_space<vmem>>, vector<8x128xf32>
    tpu.vector_store %arg5[%c0_6, %c0_7], %16 {strides = array<i32>} : memref<8x128xf32, #tpu.memory_space<vmem>>, vector<8x128xf32>,
    %c0_i32_8 = arith.constant 0 : i32
    %18 = arith.cmpi eq, %arg1, %c0_i32_8 : i32
    %19 = arith.extui %18 : i1 to i32
    %c0_i32_9 = arith.constant 0 : i32
    %20 = arith.cmpi ne, %19, %c0_i32_9 : i32
    scf.if %20 {
      %c0_10 = arith.constant 0 : index
      %c8 = arith.constant 8 : index
      %21 = vector.load %arg5[%c0_10, %c8] : memref<8x128xf32, #tpu.memory_space<vmem>>, vector<8x1xf32>
      %cst_11 = arith.constant 1.000000e+00 : f32
      %22 = vector.broadcast %cst_11 : f32 to vector<8x1xf32>
      %23 = arith.maximumf %21, %22 : vector<8x1xf32>
      %24 = tpu.reciprocal %23 {approx = true} : vector<8x1xf32> -> vector<8x1xf32>
      %c0_12 = arith.constant 0 : index
      %c0_13 = arith.constant 0 : index
      %25 = vector.load %arg5[%c0_12, %c0_13] : memref<8x128xf32, #tpu.memory_space<vmem>>, vector<8x128xf32>
      %26 = vector.broadcast %24 : vector<8x1xf32> to vector<8x128xf32>
      %27 = arith.mulf %25, %26 : vector<8x128xf32>
      %c0_14 = arith.constant 0 : index
      %c0_15 = arith.constant 0 : index
      %28 = vector.load %arg4[%c0_14, %c0_15] : memref<8x128xf32, #tpu.memory_space<vmem>>, vector<8x128xf32>
      tpu.vector_store %arg4[%c0_14, %c0_15], %27 {strides = array<i32>} : memref<8x128xf32, #tpu.memory_space<vmem>>, vector<8x128xf32>,
    } else {
    }
    return
  }
  func.func @transform_0(%arg0: i32, %arg1: i32) -> (i32, i32) {
    %c0_i32 = arith.constant 0 : i32
    %c0_i32_0 = arith.constant 0 : i32
    return %c0_i32, %arg1 : i32, i32
  }
  func.func @transform_1(%arg0: i32, %arg1: i32) -> (i32, i32) {
    %c0_i32 = arith.constant 0 : i32
    %c0_i32_0 = arith.constant 0 : i32
    return %arg1, %c0_i32 : i32, i32
  }
  func.func @transform_2(%arg0: i32, %arg1: i32) -> (i32, i32) {
    %c0_i32 = arith.constant 0 : i32
    %c0_i32_0 = arith.constant 0 : i32
    return %arg0, %c0_i32 : i32, i32
  }
}

</mosaic_0001>

<llo_original>
// kernel: average_graph_pool.3
$region0: #{average_graph_pool.3}
  #allocation0 [shape = 'u32[]', space=smem, size = 0x4, offset = 0x4, fixed_abs, tag = 'smem constant byte address 0x4 - core index']
  #allocation1 [shape = 'u32[144,128]{1,0:T(1,128)}', space=vmem, size = 0x12000, scoped, tag = 'internal scratch']
  #allocation2 [shape = 'f32[32,128]{1,0:T(8,128)}', space=vmem, size = 0x4000, scoped, tag = 'scratch operand']
  %s0 = inlined_call_operand.vmem [shape: s32[1,128], index: 0, kind: input, shape index: {}]
  %s1 = inlined_call_operand.vmem [shape: bf16[128,128], index: 1, kind: input, shape index: {}]
  %s2 = inlined_call_operand.vmem [shape: f32[32,128], index: 2, kind: output, shape index: {}]
  %s3 = sld [smem:[#allocation0]]
  $region26: #{average_graph_pool.3} parent=0
    _
  %s5 = ssub.s32 1, %s3
  %s6 = scalar_select 0, %s5, %s3
  // Predicated region
  $region2: #{average_graph_pool.3} parent=0 // pred_check
    _
  $region3: #{average_graph_pool.3} parent=0 // pred_check_branch
    %8 = sbr.rel (0) target = $region5
  $region4: #{average_graph_pool.3} parent=0 // pred_region
    _
  $region5: #{average_graph_pool.3} parent=0 // pred_fallthru
    _
  // Predicated region
  $region6: #{average_graph_pool.3} parent=0 // pred_check
    _
  $region7: #{average_graph_pool.3} parent=0 // pred_check_branch
    %10 = sbr.rel (0) target = $region9
  $region8: #{average_graph_pool.3} parent=0 // pred_region
    _
  $region9: #{average_graph_pool.3} parent=0 // pred_fallthru
    _
  %p12 = scmp.eq.s32.totalorder 0, 0
  // Predicated region
  $region10: #{average_graph_pool.3} parent=0 // pred_check
    %p13 = pneg %p12
  $region11: #{average_graph_pool.3} parent=0 // pred_check_branch
    %15 = sbr.rel (%p13) target = $region13
  $region12: #{average_graph_pool.3} parent=0 // pred_region
    %16 = vst [vmem:[#allocation2] sm:$0xff] 0.0
    %17 = vst [vmem:[#allocation2 + $0x8] sm:$0xff] 0.0
    %18 = vst [vmem:[#allocation2 + $0x10] sm:$0xff] 0.0
    %19 = vst [vmem:[#allocation2 + $0x18] sm:$0xff] 0.0
  $region13: #{average_graph_pool.3} parent=0 // pred_fallthru
    _
  %v20 = vld [vmem:[%s0] sm:$0x1]
  %s21 = smul.u32 0, 32
  %v22 = vstv %s21
  %v23 = vsub.s32 %v20, %v22
  %v24 = vlaneseq
  %v25 = vshrl.u32 %v24, 7
  %v26 = vadd.s32 %v25, 8
  %v27 = vadd.s32 %v25, 16
  %v28 = vadd.s32 %v25, 24
  %v29 = vlaneseq
  %v30 = vshrl.u32 %v29, 7
  %v31 = vsub.s32 0, %v30
  %v32 = vrot.slane %v23, %v31
  %vm33 = vcmp.eq.s32.totalorder %v25, %v32
  %vm34 = vcmp.eq.s32.totalorder %v26, %v32
  %vm35 = vcmp.eq.s32.totalorder %v27, %v32
  %vm36 = vcmp.eq.s32.totalorder %v28, %v32
  %v37 = vsel %vm33, 1, 0
  %v38 = vsel %vm34, 1, 0
  %v39 = vsel %vm35, 1, 0
  %v40 = vsel %vm36, 1, 0
  %v41 = vcvt.s32.f32 %v37
  %v42 = vcvt.s32.f32 %v38
  %v43 = vcvt.s32.f32 %v39
  %v44 = vcvt.s32.f32 %v40
  %v45 = vpack.c.bf16 %v42, %v41
  %v46 = vpack.c.bf16 %v44, %v43
  %v47 = vld [vmem:[#allocation2] sm:$0xff]
  %v48 = vld [vmem:[#allocation2 + $0x8] sm:$0xff]
  %v49 = vld [vmem:[#allocation2 + $0x10] sm:$0xff]
  %v50 = vld [vmem:[#allocation2 + $0x18] sm:$0xff]
  %v51 = vld [vmem:[%s1] sm:$0xf]
  %v52 = vld [vmem:[%s1 + $0x4] sm:$0xf]
  %v53 = vld [vmem:[%s1 + $0x8] sm:$0xf]
  %v54 = vld [vmem:[%s1 + $0xc] sm:$0xf]
  %v55 = vld [vmem:[%s1 + $0x10] sm:$0xf]
  %v56 = vld [vmem:[%s1 + $0x14] sm:$0xf]
  %v57 = vld [vmem:[%s1 + $0x18] sm:$0xf]
  %v58 = vld [vmem:[%s1 + $0x1c] sm:$0xf]
  %v59 = vld [vmem:[%s1 + $0x20] sm:$0xf]
  %v60 = vld [vmem:[%s1 + $0x24] sm:$0xf]
  %v61 = vld [vmem:[%s1 + $0x28] sm:$0xf]
  %v62 = vld [vmem:[%s1 + $0x2c] sm:$0xf]
  %v63 = vld [vmem:[%s1 + $0x30] sm:$0xf]
  %v64 = vld [vmem:[%s1 + $0x34] sm:$0xf]
  %v65 = vld [vmem:[%s1 + $0x38] sm:$0xf]
  %v66 = vld [vmem:[%s1 + $0x3c] sm:$0xf]
  %v83 = vunpack.c.l.b16 %v51
  %v84 = vunpack.c.l.b16 %v52
  %v85 = vunpack.c.l.b16 %v53
  %v86 = vunpack.c.l.b16 %v54
  %v87 = vunpack.c.l.b16 %v55
  %v88 = vunpack.c.l.b16 %v56
  %v89 = vunpack.c.l.b16 %v57
  %v90 = vunpack.c.l.b16 %v58
  %v91 = vunpack.c.l.b16 %v59
  %v92 = vunpack.c.l.b16 %v60
  %v93 = vunpack.c.l.b16 %v61
  %v94 = vunpack.c.l.b16 %v62
  %v95 = vunpack.c.l.b16 %v63
  %v96 = vunpack.c.l.b16 %v64
  %v97 = vunpack.c.l.b16 %v65
  %v98 = vunpack.c.l.b16 %v66
  %v99 = vpack.c.b16 %v84, %v83
  %v100 = vpack.c.b16 %v86, %v85
  %v101 = vpack.c.b16 %v88, %v87
  %v102 = vpack.c.b16 %v90, %v89
  %v103 = vpack.c.b16 %v92, %v91
  %v104 = vpack.c.b16 %v94, %v93
  %v105 = vpack.c.b16 %v96, %v95
  %v106 = vpack.c.b16 %v98, %v97
  %115 = vmatprep.subr.bf16.mxu0 0
  %116 = vmatpush1.bf16.msra.mxu0 %v99
  %117 = vmatprep.subr.bf16.mxu0 0
  %118 = vmatpush1.bf16.msra.mxu0 %v100
  %119 = vmatprep.subr.bf16.mxu0 0
  %120 = vmatpush1.bf16.msra.mxu0 %v101
  %121 = vmatprep.subr.bf16.mxu0 0
  %122 = vmatpush1.bf16.msra.mxu0 %v102
  %123 = vmatprep.subr.bf16.mxu0 0
  %124 = vmatpush1.bf16.msra.mxu0 %v103
  %125 = vmatprep.subr.bf16.mxu0 0
  %126 = vmatpush1.bf16.msra.mxu0 %v104
  %127 = vmatprep.subr.bf16.mxu0 0
  %128 = vmatpush1.bf16.msra.mxu0 %v105
  %129 = vmatprep.subr.bf16.mxu0 0
  %130 = vmatpush1.bf16.msra.mxu0 %v106
  %131 = vmatprep.subr.bf16.mxu0 0
  %132 = vmatpush1.bf16.msra.mxu0 0
  %133 = vmatprep.subr.bf16.mxu0 0
  %134 = vmatpush1.bf16.msra.mxu0 0
  %135 = vmatprep.subr.bf16.mxu0 0
  %136 = vmatpush1.bf16.msra.mxu0 0
  %137 = vmatprep.subr.bf16.mxu0 0
  %138 = vmatpush1.bf16.msra.mxu0 0
  %139 = vmatprep.subr.bf16.mxu0 0
  %140 = vmatpush1.bf16.msra.mxu0 0
  %141 = vmatprep.subr.bf16.mxu0 0
  %142 = vmatpush1.bf16.msra.mxu0 0
  %143 = vmatprep.subr.bf16.mxu0 0
  %144 = vmatpush1.bf16.msra.mxu0 0
  %145 = vmatprep.subr.bf16.mxu0 0
  %146 = vmatpush1.bf16.msra.mxu0 0
  %147 = vmatprep.mubr.bf16.mxu0 0
  %148 = vmatmul.mubr.bf16.gmra.mrb[0].mxu0 %v45
  %v149 = vpop.f32.mrb[0].mxu0
  %v150 = vadd.f32 0.0, %v149
  %v151 = vpop.f32.mrb[0].mxu0
  %v152 = vpop.f32.mrb[0].mxu0
  %v153 = vadd.f32 0.0, %v152
  %v154 = vpop.f32.mrb[0].mxu0
  %155 = vmatprep.mubr.bf16.mxu0 0
  %156 = vmatmul.mubr.bf16.gmra.mrb[0].mxu0 %v46
  %v157 = vpop.f32.mrb[0].mxu0
  %v158 = vadd.f32 0.0, %v157
  %v159 = vpop.f32.mrb[0].mxu0
  %v160 = vpop.f32.mrb[0].mxu0
  %v161 = vadd.f32 0.0, %v160
  %v162 = vpop.f32.mrb[0].mxu0
  %163 = vdwg.mxu0
  %v164 = vadd.f32 %v47, %v150
  %v165 = vadd.f32 %v48, %v153
  %v166 = vadd.f32 %v49, %v158
  %v167 = vadd.f32 %v50, %v161
  %168 = vst [vmem:[#allocation2] sm:$0xff] %v164
  %169 = vst [vmem:[#allocation2 + $0x8] sm:$0xff] %v165
  %170 = vst [vmem:[#allocation2 + $0x10] sm:$0xff] %v166
  %171 = vst [vmem:[#allocation2 + $0x18] sm:$0xff] %v167
  // Predicated region
  $region14: #{average_graph_pool.3} parent=0 // pred_check
    %p172 = pneg %p12
  $region15: #{average_graph_pool.3} parent=0 // pred_check_branch
    %174 = sbr.rel (%p172) target = $region17
  $region16: #{average_graph_pool.3} parent=0 // pred_region
    %v175 = vld [vmem:[#allocation2] sm:$0xff]
    %v176 = vld [vmem:[#allocation2 + $0x8] sm:$0xff]
    %v177 = vld [vmem:[#allocation2 + $0x10] sm:$0xff]
    %v178 = vld [vmem:[#allocation2 + $0x18] sm:$0xff]
    %v179 = vmax.f32 %v175, 1.0
    %v180 = vmax.f32 %v176, 1.0
    %v181 = vmax.f32 %v177, 1.0
    %v182 = vmax.f32 %v178, 1.0
    %v183 = vrcp.pop %v179
    %v184 = vrcp.pop %v180
    %v185 = vrcp.pop %v181
    %v186 = vrcp.pop %v182
    %188 = vset.pattern.permute.xlu0 8
    %189 = vperm.xlu0 %188, %v183
    %v190 = vpop.permute.xlu0 %189
    %193 = vset.pattern.permute.xlu0 8
    %194 = vperm.xlu0 %193, %v184
    %v195 = vpop.permute.xlu0 %194
    %198 = vset.pattern.permute.xlu0 8
    %199 = vperm.xlu0 %198, %v185
    %v200 = vpop.permute.xlu0 %199
    %203 = vset.pattern.permute.xlu0 8
    %204 = vperm.xlu0 %203, %v186
    %v205 = vpop.permute.xlu0 %204
    %v207 = vmul.f32 %v175, %v190
    %v208 = vmul.f32 %v176, %v195
    %v209 = vmul.f32 %v177, %v200
    %v210 = vmul.f32 %v178, %v205
    %211 = vst [vmem:[%s2] sm:$0xff] %v207
    %212 = vst [vmem:[%s2 + $0x8] sm:$0xff] %v208
    %213 = vst [vmem:[%s2 + $0x10] sm:$0xff] %v209
    %214 = vst [vmem:[%s2 + $0x18] sm:$0xff] %v210
  $region17: #{average_graph_pool.3} parent=0 // pred_fallthru
    _
  // Predicated region
  $region18: #{average_graph_pool.3} parent=0 // pred_check
    _
  $region19: #{average_graph_pool.3} parent=0 // pred_check_branch
    %216 = sbr.rel (0) target = $region21
  $region20: #{average_graph_pool.3} parent=0 // pred_region
    _
  $region21: #{average_graph_pool.3} parent=0 // pred_fallthru
    _
  // Predicated region
  $region22: #{average_graph_pool.3} parent=0 // pred_check
    _
  $region23: #{average_graph_pool.3} parent=0 // pred_check_branch
    %218 = sbr.rel (0) target = $region25
  $region24: #{average_graph_pool.3} parent=0 // pred_region
    _
  $region25: #{average_graph_pool.3} parent=0 // pred_fallthru
    _

// kernel: average_graph_pool.2
$region0: #{average_graph_pool.2}
  #allocation0 [shape = 'u32[]', space=smem, size = 0x4, offset = 0x4, fixed_abs, tag = 'smem constant byte address 0x4 - core index']
  #allocation1 [shape = 'u32[144,128]{1,0:T(1,128)}', space=vmem, size = 0x12000, scoped, tag = 'internal scratch']
  #allocation2 [shape = 'f32[8,128]{1,0:T(8,128)}', space=vmem, size = 0x1000, scoped, tag = 'scratch operand']
  %s0 = inlined_call_operand.vmem [shape: s32[1,128], index: 0, kind: input, shape index: {}]
  %s1 = inlined_call_operand.vmem [shape: bf16[128,128], index: 1, kind: input, shape index: {}]
  %s2 = inlined_call_operand.hbm [shape: f32[8,128], index: 2, kind: output, shape index: {}]
  %s3 = sld [smem:[#allocation0]]
  $region26: #{average_graph_pool.2} parent=0
    _
  %s5 = ssub.s32 1, %s3
  %s6 = scalar_select 0, %s5, %s3
  $region1: #{average_graph_pool.2} parent=0
    #allocation3 [shape = 'u8[4096]{0}', space=vmem, size = 0x1000, scoped, tag = 'output window, operand 0, single buffered']
    #allocation4 [shape = 's32[1]{0}', space=sflag, size = 0x4, scoped, tag = 'scoped memory for average_graph_pool.2']
    %7 = vsyncpa [#allocation4], 0
    // Predicated region
    $region2: #{average_graph_pool.2} parent=1 // pred_check
      _
    $region3: #{average_graph_pool.2} parent=1 // pred_check_branch
      %9 = sbr.rel (0) target = $region5
    $region4: #{average_graph_pool.2} parent=1 // pred_region
      _
    $region5: #{average_graph_pool.2} parent=1 // pred_fallthru
      _
    // Predicated region
    $region6: #{average_graph_pool.2} parent=1 // pred_check
      _
    $region7: #{average_graph_pool.2} parent=1 // pred_check_branch
      %11 = sbr.rel (0) target = $region9
    $region8: #{average_graph_pool.2} parent=1 // pred_region
      _
    $region9: #{average_graph_pool.2} parent=1 // pred_fallthru
      _
    %p13 = scmp.eq.s32.totalorder 0, 0
    // Predicated region
    $region10: #{average_graph_pool.2} parent=1 // pred_check
      %p14 = pneg %p13
    $region11: #{average_graph_pool.2} parent=1 // pred_check_branch
      %16 = sbr.rel (%p14) target = $region13
    $region12: #{average_graph_pool.2} parent=1 // pred_region
      %17 = vst [vmem:[#allocation2] sm:$0xff] 0.0
    $region13: #{average_graph_pool.2} parent=1 // pred_fallthru
      _
    %v18 = vld [vmem:[%s0] sm:$0x1]
    %s19 = smul.u32 0, 8
    %v20 = vstv %s19
    %v21 = vsub.s32 %v18, %v20
    %v22 = vlaneseq
    %v23 = vshrl.u32 %v22, 7
    %v24 = vlaneseq
    %v25 = vshrl.u32 %v24, 7
    %v26 = vsub.s32 0, %v25
    %v27 = vrot.slane %v21, %v26
    %vm28 = vcmp.eq.s32.totalorder %v23, %v27
    %v29 = vsel %vm28, 1, 0
    %v30 = vcvt.s32.f32 %v29
    %v31 = vpack.c.bf16 %v30, %v30
    %v32 = vld [vmem:[#allocation2] sm:$0xff]
    %v33 = vld [vmem:[%s1] sm:$0xf]
    %v34 = vld [vmem:[%s1 + $0x4] sm:$0xf]
    %v35 = vld [vmem:[%s1 + $0x8] sm:$0xf]
    %v36 = vld [vmem:[%s1 + $0xc] sm:$0xf]
    %v37 = vld [vmem:[%s1 + $0x10] sm:$0xf]
    %v38 = vld [vmem:[%s1 + $0x14] sm:$0xf]
    %v39 = vld [vmem:[%s1 + $0x18] sm:$0xf]
    %v40 = vld [vmem:[%s1 + $0x1c] sm:$0xf]
    %v41 = vld [vmem:[%s1 + $0x20] sm:$0xf]
    %v42 = vld [vmem:[%s1 + $0x24] sm:$0xf]
    %v43 = vld [vmem:[%s1 + $0x28] sm:$0xf]
    %v44 = vld [vmem:[%s1 + $0x2c] sm:$0xf]
    %v45 = vld [vmem:[%s1 + $0x30] sm:$0xf]
    %v46 = vld [vmem:[%s1 + $0x34] sm:$0xf]
    %v47 = vld [vmem:[%s1 + $0x38] sm:$0xf]
    %v48 = vld [vmem:[%s1 + $0x3c] sm:$0xf]
    %v65 = vunpack.c.l.b16 %v33
    %v66 = vunpack.c.l.b16 %v34
    %v67 = vunpack.c.l.b16 %v35
    %v68 = vunpack.c.l.b16 %v36
    %v69 = vunpack.c.l.b16 %v37
    %v70 = vunpack.c.l.b16 %v38
    %v71 = vunpack.c.l.b16 %v39
    %v72 = vunpack.c.l.b16 %v40
    %v73 = vunpack.c.l.b16 %v41
    %v74 = vunpack.c.l.b16 %v42
    %v75 = vunpack.c.l.b16 %v43
    %v76 = vunpack.c.l.b16 %v44
    %v77 = vunpack.c.l.b16 %v45
    %v78 = vunpack.c.l.b16 %v46
    %v79 = vunpack.c.l.b16 %v47
    %v80 = vunpack.c.l.b16 %v48
    %v81 = vpack.c.b16 %v66, %v65
    %v82 = vpack.c.b16 %v68, %v67
    %v83 = vpack.c.b16 %v70, %v69
    %v84 = vpack.c.b16 %v72, %v71
    %v85 = vpack.c.b16 %v74, %v73
    %v86 = vpack.c.b16 %v76, %v75
    %v87 = vpack.c.b16 %v78, %v77
    %v88 = vpack.c.b16 %v80, %v79
    %97 = vmatprep.subr.bf16.mxu0 0
    %98 = vmatpush1.bf16.msra.mxu0 %v81
    %99 = vmatprep.subr.bf16.mxu0 0
    %100 = vmatpush1.bf16.msra.mxu0 %v82
    %101 = vmatprep.subr.bf16.mxu0 0
    %102 = vmatpush1.bf16.msra.mxu0 %v83
    %103 = vmatprep.subr.bf16.mxu0 0
    %104 = vmatpush1.bf16.msra.mxu0 %v84
    %105 = vmatprep.subr.bf16.mxu0 0
    %106 = vmatpush1.bf16.msra.mxu0 %v85
    %107 = vmatprep.subr.bf16.mxu0 0
    %108 = vmatpush1.bf16.msra.mxu0 %v86
    %109 = vmatprep.subr.bf16.mxu0 0
    %110 = vmatpush1.bf16.msra.mxu0 %v87
    %111 = vmatprep.subr.bf16.mxu0 0
    %112 = vmatpush1.bf16.msra.mxu0 %v88
    %113 = vmatprep.subr.bf16.mxu0 0
    %114 = vmatpush1.bf16.msra.mxu0 0
    %115 = vmatprep.subr.bf16.mxu0 0
    %116 = vmatpush1.bf16.msra.mxu0 0
    %117 = vmatprep.subr.bf16.mxu0 0
    %118 = vmatpush1.bf16.msra.mxu0 0
    %119 = vmatprep.subr.bf16.mxu0 0
    %120 = vmatpush1.bf16.msra.mxu0 0
    %121 = vmatprep.subr.bf16.mxu0 0
    %122 = vmatpush1.bf16.msra.mxu0 0
    %123 = vmatprep.subr.bf16.mxu0 0
    %124 = vmatpush1.bf16.msra.mxu0 0
    %125 = vmatprep.subr.bf16.mxu0 0
    %126 = vmatpush1.bf16.msra.mxu0 0
    %127 = vmatprep.subr.bf16.mxu0 0
    %128 = vmatpush1.bf16.msra.mxu0 0
    %129 = vmatprep.mubr.bf16.mxu0 0
    %130 = vmatmul.mubr.bf16.gmra.mrb[0].mxu0 %v31
    %v131 = vpop.f32.mrb[0].mxu0
    %v132 = vadd.f32 0.0, %v131
    %v133 = vpop.f32.mrb[0].mxu0
    %v134 = vpop.f32.mrb[0].mxu0
    %v135 = vpop.f32.mrb[0].mxu0
    %136 = vdwg.mxu0
    %v137 = vadd.f32 %v32, %v132
    %138 = vst [vmem:[#allocation2] sm:$0xff] %v137
    // Predicated region
    $region14: #{average_graph_pool.2} parent=1 // pred_check
      %p139 = pneg %p13
    $region15: #{average_graph_pool.2} parent=1 // pred_check_branch
      %141 = sbr.rel (%p139) target = $region17
    $region16: #{average_graph_pool.2} parent=1 // pred_region
      %v142 = vld [vmem:[#allocation2] sm:$0xff]
      %v143 = vmax.f32 %v142, 1.0
      %v144 = vrcp.pop %v143
      %146 = vset.pattern.permute.xlu0 8
      %147 = vperm.xlu0 %146, %v144
      %v148 = vpop.permute.xlu0 %147
      %v150 = vmul.f32 %v142, %v148
      %151 = vst [vmem:[#allocation3] sm:$0xff] %v150
    $region17: #{average_graph_pool.2} parent=1 // pred_fallthru
      _
    // Predicated region
    $region18: #{average_graph_pool.2} parent=1 // pred_check
      _
    $region19: #{average_graph_pool.2} parent=1 // pred_check_branch
      %153 = sbr.rel (0) target = $region21
    $region20: #{average_graph_pool.2} parent=1 // pred_region
      %s155 = ssub.s32 128, 128
      %156 = vsyncadd [#allocation4], %s155
      %s158 = sshll.u32 [#allocation3], 4
      %s159 = int_to_ptr.vmem [resolvable:$true] %s158
      %161 = dma.vmem_to_hbm [thread:$0]  %s159, 128, %s2, [#allocation4]
    $region21: #{average_graph_pool.2} parent=1 // pred_fallthru
      _
    // Predicated region
    $region22: #{average_graph_pool.2} parent=1 // pred_check
      _
    $region23: #{average_graph_pool.2} parent=1 // pred_check_branch
      %163 = sbr.rel (0) target = $region25
    $region24: #{average_graph_pool.2} parent=1 // pred_region
      %164 = dma.done [#allocation4], 128
    $region25: #{average_graph_pool.2} parent=1 // pred_fallthru
      _
    %165 = vsyncpa [#allocation4], 1

</llo_original>
